<compile_context>
chip_gen: v6e
topology: v6e:2x2x1
jax: 0.10.0
libtpu: 0.0.40
codegen_flags: <defaults>
</compile_context>

<pallas_src>
import functools

import jax
import jax.numpy as jnp
from jax.experimental import pallas as pl
from jax.experimental.pallas import tpu as pltpu


# ------------------------------ helpers -------------------------------------
def extract_patches(img, patch):
    """NCHW image -> (B, P, C*patch*patch) patches, channel-first flatten."""
    b, c, hh, ww = img.shape
    x = img.reshape(b, c, hh // patch, patch, ww // patch, patch)
    x = x.transpose(0, 2, 4, 1, 3, 5)            # (B, Hp, Wp, C, ph, pw)
    return x.reshape(b, (hh // patch) * (ww // patch), c * patch * patch)


# ------------------------------ JAX wrapper ---------------------------------
@functools.partial(jax.jit, static_argnames=("patch",))
def joint_model_forward(img, sg_nodes, sg_adj, params, *, patch=4):
    # -------- wrapper-side layout plumbing (free for the kernel) -----------
    patches = extract_patches(img, patch).astype(jnp.float32)      # (B, P, Dp)
    B, P, Dp = patches.shape

    nodes = sg_nodes.astype(jnp.float32)                            # (B, N, Fn)
    _, N, Fn = nodes.shape

    adj = sg_adj.astype(jnp.float32)                                # (B, R, N, N)
    R = adj.shape[1]

    wp = params['wp'].astype(jnp.float32)                           # (Dp, Dv)
    Dv = wp.shape[1]
    wself = params['wself'].astype(jnp.float32)                     # (Fn, Dr)
    Dr = wself.shape[1]
    wrel = params['wrel'].astype(jnp.float32)                       # (R, Fn, Dr)
    whead = params['whead'].astype(jnp.float32)                     # (Dv+Dr, C)
    C = whead.shape[1]

    # ---- fused relational operands -----------------------------------------
    # nodes_blk[b, r*N + n, r*Fn + f] = nodes[b, n, f]   (block-structured
    # node replication) so ONE matmul against the stacked weight gives the
    # per-relation messages already laid out (B, (R+1)*N, Dr).
    eye_r = jnp.eye(R + 1, dtype=jnp.float32)
    nodes_blk = jnp.einsum('bnf,rs->brnsf', nodes, eye_r)
    nodes_blk = nodes_blk.reshape(B, (R + 1) * N, (R + 1) * Fn)

    # w_stack rows [r*Fn:(r+1)*Fn] = wrel[r] for r < R, block R = wself.
    w_stack = jnp.concatenate([wrel.reshape(R * Fn, Dr), wself], axis=0)

    # Identity-augmented, relation-concatenated (lane-dense) adjacency:
    #   adj_cat[b, n, r*N + m] = adj[b, r, n, m]   for r < R
    #   adj_cat[b, n, R*N + n] = 1                 (self loop)
    eye_n = jnp.broadcast_to(jnp.eye(N, dtype=jnp.float32), (B, 1, N, N))
    adj_aug = jnp.concatenate([adj, eye_n], axis=1)                 # (B, R+1, N, N)
    adj_cat = adj_aug.transpose(0, 2, 1, 3).reshape(B, N, (R + 1) * N)

    # ---- head: pre-split, fold 1/P and 1/N mean scales (means -> sums) -----
    whead_vit = whead[:Dv] / P                                       # (Dv, C)
    whead_sg = whead[Dv:] / N                                        # (Dr, C)

    # ---- biases -------------------------------------------------------------
    vit_bias = (params['pos'] + params['bp']).astype(jnp.float32)   # (P, Dv)
    W = max(Dr, C)
    small_bias = jnp.zeros((2, W), jnp.float32)
    small_bias = small_bias.at[0, :Dr].set(params['brgcn'].reshape(-1))
    small_bias = small_bias.at[1, :C].set(params['bhead'].reshape(-1))

    # ---- bf16 MXU operands (f32 accumulation kept in-kernel) ---------------
    bf = jnp.bfloat16
    patches_b = patches.astype(bf)
    wp_b = wp.astype(bf)
    nodes_blk_b = nodes_blk.astype(bf)
    w_stack_b = w_stack.astype(bf)
    adj_cat_b = adj_cat.astype(bf)                                  # 0/1 exact
    whv_b = whead_vit.astype(bf)
    whs_b = whead_sg.astype(bf)

    RN = (R + 1) * N
    RF = (R + 1) * Fn

    # ----------------------------- Pallas kernel ----------------------------
    def kernel(patches_ref, wp_ref, vit_bias_ref, nodes_blk_ref, w_stack_ref,
               adj_cat_ref, small_bias_ref, whv_ref, whs_ref, out_ref):
        # ---- ViT (headless): patch embed + GELU + pool ---------------------
        h = jnp.dot(patches_ref[0], wp_ref[...],
                    preferred_element_type=jnp.float32)              # (P, Dv)
        h = jax.nn.gelu(h + vit_bias_ref[...], approximate=True)
        vit_sum = jnp.sum(h, axis=0, keepdims=True)                  # (1, Dv)

        # ---- RGCN (headless): fused relational layer + pool ----------------
        xr = jnp.dot(nodes_blk_ref[0], w_stack_ref[...],
                     preferred_element_type=jnp.float32)             # ((R+1)*N, Dr)
        agg = jnp.dot(adj_cat_ref[0], xr.astype(jnp.bfloat16),
                      preferred_element_type=jnp.float32)            # (N, Dr)
        agg = jnp.maximum(agg + small_bias_ref[0:1, 0:Dr], 0.0)      # +bias, ReLU
        sg_sum = jnp.sum(agg, axis=0, keepdims=True)                 # (1, Dr)

        # ---- Joint head: (pre-split, mean-folded) linear -> softmax --------
        logits = (jnp.dot(vit_sum.astype(jnp.bfloat16), whv_ref[...],
                          preferred_element_type=jnp.float32)
                  + jnp.dot(sg_sum.astype(jnp.bfloat16), whs_ref[...],
                            preferred_element_type=jnp.float32)
                  + small_bias_ref[1:2, 0:C])                        # (1, C)
        m = jnp.max(logits, axis=-1, keepdims=True)
        e = jnp.exp(logits - m)
        denom = jnp.sum(e, axis=-1, keepdims=True)
        out_ref[0] = e * pl.reciprocal(denom, approx=True)

    args = (patches_b, wp_b, vit_bias, nodes_blk_b, w_stack_b,
            adj_cat_b, small_bias, whv_b, whs_b)

    in_specs = [
        pl.BlockSpec((1, P, Dp), lambda b: (b, 0, 0)),        # patches (per batch)
        pl.BlockSpec((Dp, Dv), lambda b: (0, 0)),             # wp (resident)
        pl.BlockSpec((P, Dv), lambda b: (0, 0)),              # pos+bp (resident)
        pl.BlockSpec((1, RN, RF), lambda b: (b, 0, 0)),       # nodes_blk (per batch)
        pl.BlockSpec((RF, Dr), lambda b: (0, 0)),             # w_stack (resident)
        pl.BlockSpec((1, N, RN), lambda b: (b, 0, 0)),        # adj_cat (per batch)
        pl.BlockSpec((2, W), lambda b: (0, 0)),               # brgcn/bhead (resident)
        pl.BlockSpec((Dv, C), lambda b: (0, 0)),              # head (vit half)
        pl.BlockSpec((Dr, C), lambda b: (0, 0)),              # head (sg half)
    ]

    # TODO(synk): when B grows, raise the batch tile above 1 and size it
    # against v7x's 64 MiB VMEM (vmem_limit_bytes) rather than v5e/v6e's 128.
    out = pl.pallas_call(
        kernel,
        out_shape=jax.ShapeDtypeStruct((B, 1, C), jnp.float32),
        grid=(B,),
        in_specs=in_specs,
        out_specs=pl.BlockSpec((1, 1, C), lambda b: (b, 0, 0)),
        compiler_params=pltpu.CompilerParams(
            dimension_semantics=("parallel",)),
    )(*args)
    return out.reshape(B, C)


# --------------------------- pure-JAX reference ------------------------------
def reference_forward(img, sg_nodes, sg_adj, params, *, patch=4):
    patches = extract_patches(img, patch).astype(jnp.float32)
    h = jnp.einsum('bpd,dh->bph', patches, params['wp'],
                   preferred_element_type=jnp.float32)
    h = h + params['pos'][None] + params['bp'][None]
    h = jax.nn.gelu(h, approximate=True)
    vit_feat = jnp.mean(h, axis=1)

    x, adj = sg_nodes, sg_adj
    agg = jnp.einsum('bnf,fh->bnh', x, params['wself'],
                     preferred_element_type=jnp.float32)
    for r in range(adj.shape[1]):
        xr = jnp.einsum('bnf,fh->bnh', x, params['wrel'][r],
                        preferred_element_type=jnp.float32)
        agg = agg + jnp.einsum('bnm,bmh->bnh', adj[:, r], xr,
                               preferred_element_type=jnp.float32)
    sg_feat = jnp.mean(jnp.maximum(agg + params['brgcn'][None], 0.0), axis=1)

    hidden = jnp.concatenate([vit_feat, sg_feat], axis=1)
    logits = jnp.dot(hidden, params['whead'],
                     preferred_element_type=jnp.float32) + params['bhead']
    return jax.nn.softmax(logits, axis=-1)


# --------------------------------- main --------------------------------------
if __name__ == "__main__":
    # Sizes implied by the module (small, synthetic).
    B, C_IMG, HW, PATCH = 2, 3, 16, 4
    NUM_PATCHES = (HW // PATCH) ** 2            # 16
    DP = C_IMG * PATCH * PATCH                  # 48
    VIT_HIDDEN = 32
    # rgcn_params = (num_obj_classes, node_feature_size, rgcn_hidden_dim, num_rel_classes)
    NUM_OBJ, NODE_F, RGCN_HIDDEN, NUM_REL = 10, 16, 32, 4
    N_NODES = 8
    NUM_CLASSES = 5

    key = jax.random.PRNGKey(0)
    (k_img, k_node, k_adj, k_wp, k_pos, k_wrel,
     k_wself, k_whead) = jax.random.split(key, 8)

    # Inputs
    img = jax.random.normal(k_img, (B, C_IMG, HW, HW), dtype=jnp.float32)
    sg_nodes = jax.random.normal(k_node, (B, N_NODES, NODE_F), dtype=jnp.float32)
    sg_adj = (jax.random.uniform(k_adj, (B, NUM_REL, N_NODES, N_NODES))
              < 0.3).astype(jnp.float32)

    # Deterministic parameter init (scaled normals; biases as (1, D)).
    params = {
        'wp':    0.05 * jax.random.normal(k_wp, (DP, VIT_HIDDEN), dtype=jnp.float32),
        'bp':    jnp.zeros((1, VIT_HIDDEN), dtype=jnp.float32),
        'pos':   0.02 * jax.random.normal(k_pos, (NUM_PATCHES, VIT_HIDDEN), dtype=jnp.float32),
        'wrel':  0.05 * jax.random.normal(k_wrel, (NUM_REL, NODE_F, RGCN_HIDDEN), dtype=jnp.float32),
        'wself': 0.05 * jax.random.normal(k_wself, (NODE_F, RGCN_HIDDEN), dtype=jnp.float32),
        'brgcn': jnp.zeros((1, RGCN_HIDDEN), dtype=jnp.float32),
        'whead': 0.05 * jax.random.normal(k_whead, (VIT_HIDDEN + RGCN_HIDDEN, NUM_CLASSES), dtype=jnp.float32),
        'bhead': jnp.zeros((1, NUM_CLASSES), dtype=jnp.float32),
    }
    # TODO(synk): NUM_OBJ (num_obj_classes) only shapes an embedding lookup in
    # the real RGCN; node features are dense here.

    out = joint_model_forward(img, sg_nodes, sg_adj, params, patch=PATCH)
    out = jax.block_until_ready(out)

    ref = reference_forward(img, sg_nodes, sg_adj, params, patch=PATCH)
    assert out.shape == (B, NUM_CLASSES)
    # bf16 MXU operands + approx reciprocal -> relaxed tolerance vs f32 ref.
    assert jnp.allclose(jnp.sum(out, axis=-1), 1.0, atol=5e-3)
    assert jnp.allclose(out, ref, atol=2e-2, rtol=2e-2)

    print("KERNEL_OK")
</pallas_src>

<mosaic_0001>
module attributes {stable_mosaic.version = 11 : i64} {
  func.func @kernel(%arg0: i32, %arg1: memref<1x16x48xbf16, #tpu.memory_space<vmem>>, %arg2: memref<48x32xbf16, #tpu.memory_space<vmem>>, %arg3: memref<16x32xf32, #tpu.memory_space<vmem>>, %arg4: memref<1x40x80xbf16, #tpu.memory_space<vmem>>, %arg5: memref<80x32xbf16, #tpu.memory_space<vmem>>, %arg6: memref<1x8x40xbf16, #tpu.memory_space<vmem>>, %arg7: memref<2x32xf32, #tpu.memory_space<vmem>>, %arg8: memref<32x5xbf16, #tpu.memory_space<vmem>>, %arg9: memref<32x5xbf16, #tpu.memory_space<vmem>>, %arg10: memref<1x1x5xf32, #tpu.memory_space<vmem>>) attributes {dimension_semantics = [#tpu.dimension_semantics<parallel>], iteration_bounds = array<i64: 2>, scalar_prefetch = 0 : i64, scratch_operands = 0 : i64, tpu.core_type = #tpu.core_type<tc>, window_params = [{transform_indices = @transform_0, window_bounds = array<i64: 1, 16, 48>}, {pipeline_mode = #tpu.pipeline_mode<synchronous>, transform_indices = @transform_1, window_bounds = array<i64: 48, 32>}, {pipeline_mode = #tpu.pipeline_mode<synchronous>, transform_indices = @transform_2, window_bounds = array<i64: 16, 32>}, {transform_indices = @transform_3, window_bounds = array<i64: 1, 40, 80>}, {pipeline_mode = #tpu.pipeline_mode<synchronous>, transform_indices = @transform_4, window_bounds = array<i64: 80, 32>}, {transform_indices = @transform_5, window_bounds = array<i64: 1, 8, 40>}, {pipeline_mode = #tpu.pipeline_mode<synchronous>, transform_indices = @transform_6, window_bounds = array<i64: 2, 32>}, {pipeline_mode = #tpu.pipeline_mode<synchronous>, transform_indices = @transform_7, window_bounds = array<i64: 32, 5>}, {pipeline_mode = #tpu.pipeline_mode<synchronous>, transform_indices = @transform_8, window_bounds = array<i64: 32, 5>}, {transform_indices = @transform_9, window_bounds = array<i64: 1, 1, 5>}]} {
    %c0 = arith.constant 0 : index
    %c0_0 = arith.constant 0 : index
    %c0_1 = arith.constant 0 : index
    %0 = vector.load %arg1[%c0, %c0_0, %c0_1] : memref<1x16x48xbf16, #tpu.memory_space<vmem>>, vector<1x16x48xbf16>
    %1 = vector.shape_cast %0 : vector<1x16x48xbf16> to vector<16x48xbf16>
    %c0_2 = arith.constant 0 : index
    %c0_3 = arith.constant 0 : index
    %2 = vector.load %arg2[%c0_2, %c0_3] : memref<48x32xbf16, #tpu.memory_space<vmem>>, vector<48x32xbf16>
    %cst = arith.constant dense<0.000000e+00> : vector<16x32xf32>
    %3 = tpu.matmul %1, %2, %cst {dimension_numbers = #tpu.dot_dimension_numbers<[1], [0], [0], [1], [0, 0, 1, 1], [], []>} : vector<16x48xbf16>, vector<48x32xbf16>, vector<16x32xf32> -> vector<16x32xf32>
    %c0_4 = arith.constant 0 : index
    %c0_5 = arith.constant 0 : index
    %4 = vector.load %arg3[%c0_4, %c0_5] : memref<16x32xf32, #tpu.memory_space<vmem>>, vector<16x32xf32>
    %5 = arith.addf %3, %4 : vector<16x32xf32>
    %6 = arith.mulf %5, %5 : vector<16x32xf32>
    %7 = arith.mulf %5, %6 : vector<16x32xf32>
    %cst_6 = arith.constant 4.471500e-02 : f32
    %8 = vector.broadcast %cst_6 : f32 to vector<16x32xf32>
    %9 = arith.mulf %8, %7 : vector<16x32xf32>
    %10 = arith.addf %5, %9 : vector<16x32xf32>
    %cst_7 = arith.constant 0.797884583 : f32
    %11 = vector.broadcast %cst_7 : f32 to vector<16x32xf32>
    %12 = arith.mulf %11, %10 : vector<16x32xf32>
    %13 = math.tanh %12 : vector<16x32xf32>
    %cst_8 = arith.constant 1.000000e+00 : f32
    %14 = vector.broadcast %cst_8 : f32 to vector<16x32xf32>
    %15 = arith.addf %14, %13 : vector<16x32xf32>
    %cst_9 = arith.constant 5.000000e-01 : f32
    %16 = vector.broadcast %cst_9 : f32 to vector<16x32xf32>
    %17 = arith.mulf %16, %15 : vector<16x32xf32>
    %18 = arith.mulf %5, %17 : vector<16x32xf32>
    %cst_10 = arith.constant dense<0.000000e+00> : vector<32xf32>
    %19 = vector.multi_reduction <add>, %18, %cst_10 [0] : vector<16x32xf32> to vector<32xf32>
    %20 = vector.shape_cast %19 : vector<32xf32> to vector<1x32xf32>
    %c0_11 = arith.constant 0 : index
    %c0_12 = arith.constant 0 : index
    %c0_13 = arith.constant 0 : index
    %21 = vector.load %arg4[%c0_11, %c0_12, %c0_13] : memref<1x40x80xbf16, #tpu.memory_space<vmem>>, vector<1x40x80xbf16>
    %22 = vector.shape_cast %21 : vector<1x40x80xbf16> to vector<40x80xbf16>
    %c0_14 = arith.constant 0 : index
    %c0_15 = arith.constant 0 : index
    %23 = vector.load %arg5[%c0_14, %c0_15] : memref<80x32xbf16, #tpu.memory_space<vmem>>, vector<80x32xbf16>
    %cst_16 = arith.constant dense<0.000000e+00> : vector<40x32xf32>
    %24 = tpu.matmul %22, %23, %cst_16 {dimension_numbers = #tpu.dot_dimension_numbers<[1], [0], [0], [1], [0, 0, 1, 1], [], []>} : vector<40x80xbf16>, vector<80x32xbf16>, vector<40x32xf32> -> vector<40x32xf32>
    %c0_17 = arith.constant 0 : index
    %c0_18 = arith.constant 0 : index
    %c0_19 = arith.constant 0 : index
    %25 = vector.load %arg6[%c0_17, %c0_18, %c0_19] : memref<1x8x40xbf16, #tpu.memory_space<vmem>>, vector<1x8x40xbf16>
    %26 = vector.shape_cast %25 : vector<1x8x40xbf16> to vector<8x40xbf16>
    %27 = arith.truncf %24 : vector<40x32xf32> to vector<40x32xbf16>
    %cst_20 = arith.constant dense<0.000000e+00> : vector<8x32xf32>
    %28 = tpu.matmul %26, %27, %cst_20 {dimension_numbers = #tpu.dot_dimension_numbers<[1], [0], [0], [1], [0, 0, 1, 1], [], []>} : vector<8x40xbf16>, vector<40x32xbf16>, vector<8x32xf32> -> vector<8x32xf32>
    %c0_21 = arith.constant 0 : index
    %c0_22 = arith.constant 0 : index
    %29 = vector.load %arg7[%c0_21, %c0_22] : memref<2x32xf32, #tpu.memory_space<vmem>>, vector<1x32xf32>
    %30 = vector.broadcast %29 : vector<1x32xf32> to vector<8x32xf32>
    %31 = arith.addf %28, %30 : vector<8x32xf32>
    %cst_23 = arith.constant 0.000000e+00 : f32
    %32 = vector.broadcast %cst_23 : f32 to vector<8x32xf32>
    %33 = arith.maximumf %31, %32 : vector<8x32xf32>
    %cst_24 = arith.constant dense<0.000000e+00> : vector<32xf32>
    %34 = vector.multi_reduction <add>, %33, %cst_24 [0] : vector<8x32xf32> to vector<32xf32>
    %35 = vector.shape_cast %34 : vector<32xf32> to vector<1x32xf32>
    %36 = arith.truncf %20 : vector<1x32xf32> to vector<1x32xbf16>
    %c0_25 = arith.constant 0 : index
    %c0_26 = arith.constant 0 : index
    %37 = vector.load %arg8[%c0_25, %c0_26] : memref<32x5xbf16, #tpu.memory_space<vmem>>, vector<32x5xbf16>
    %cst_27 = arith.constant dense<0.000000e+00> : vector<1x5xf32>
    %38 = tpu.matmul %36, %37, %cst_27 {dimension_numbers = #tpu.dot_dimension_numbers<[1], [0], [0], [1], [0, 0, 1, 1], [], []>} : vector<1x32xbf16>, vector<32x5xbf16>, vector<1x5xf32> -> vector<1x5xf32>
    %39 = arith.truncf %35 : vector<1x32xf32> to vector<1x32xbf16>
    %c0_28 = arith.constant 0 : index
    %c0_29 = arith.constant 0 : index
    %40 = vector.load %arg9[%c0_28, %c0_29] : memref<32x5xbf16, #tpu.memory_space<vmem>>, vector<32x5xbf16>
    %cst_30 = arith.constant dense<0.000000e+00> : vector<1x5xf32>
    %41 = tpu.matmul %39, %40, %cst_30 {dimension_numbers = #tpu.dot_dimension_numbers<[1], [0], [0], [1], [0, 0, 1, 1], [], []>} : vector<1x32xbf16>, vector<32x5xbf16>, vector<1x5xf32> -> vector<1x5xf32>
    %42 = arith.addf %38, %41 : vector<1x5xf32>
    %c1 = arith.constant 1 : index
    %c0_31 = arith.constant 0 : index
    %43 = vector.load %arg7[%c1, %c0_31] : memref<2x32xf32, #tpu.memory_space<vmem>>, vector<1x5xf32>
    %44 = arith.addf %42, %43 : vector<1x5xf32>
    %cst_32 = arith.constant dense<0xFF800000> : vector<1xf32>
    %45 = vector.multi_reduction <maximumf>, %44, %cst_32 [1] : vector<1x5xf32> to vector<1xf32>
    %46 = vector.shape_cast %45 : vector<1xf32> to vector<1x1xf32>
    %47 = vector.broadcast %46 : vector<1x1xf32> to vector<1x5xf32>
    %48 = arith.subf %44, %47 : vector<1x5xf32>
    %49 = math.exp %48 : vector<1x5xf32>
    %cst_33 = arith.constant dense<0.000000e+00> : vector<1xf32>
    %50 = vector.multi_reduction <add>, %49, %cst_33 [1] : vector<1x5xf32> to vector<1xf32>
    %51 = vector.shape_cast %50 : vector<1xf32> to vector<1x1xf32>
    %52 = tpu.reciprocal %51 {approx = true} : vector<1x1xf32> -> vector<1x1xf32>
    %53 = vector.broadcast %52 : vector<1x1xf32> to vector<1x5xf32>
    %54 = arith.mulf %49, %53 : vector<1x5xf32>
    %c0_34 = arith.constant 0 : index
    %c0_35 = arith.constant 0 : index
    %c0_36 = arith.constant 0 : index
    %55 = vector.load %arg10[%c0_34, %c0_35, %c0_36] : memref<1x1x5xf32, #tpu.memory_space<vmem>>, vector<1x1x5xf32>
    %56 = vector.shape_cast %55 : vector<1x1x5xf32> to vector<1x5xf32>
    %57 = vector.shape_cast %54 : vector<1x5xf32> to vector<1x1x5xf32>
    tpu.vector_store %arg10[%c0_34, %c0_35, %c0_36], %57 {strides = array<i32>} : memref<1x1x5xf32, #tpu.memory_space<vmem>>, vector<1x1x5xf32>,
    return
  }
  func.func @transform_0(%arg0: i32) -> (i32, i32, i32) {
    %c0_i32 = arith.constant 0 : i32
    %c0_i32_0 = arith.constant 0 : i32
    %c0_i32_1 = arith.constant 0 : i32
    return %arg0, %c0_i32, %c0_i32_0 : i32, i32, i32
  }
  func.func @transform_1(%arg0: i32) -> (i32, i32) {
    %c0_i32 = arith.constant 0 : i32
    %c0_i32_0 = arith.constant 0 : i32
    %c0_i32_1 = arith.constant 0 : i32
    return %c0_i32, %c0_i32_0 : i32, i32
  }
  func.func @transform_2(%arg0: i32) -> (i32, i32) {
    %c0_i32 = arith.constant 0 : i32
    %c0_i32_0 = arith.constant 0 : i32
    %c0_i32_1 = arith.constant 0 : i32
    return %c0_i32, %c0_i32_0 : i32, i32
  }
  func.func @transform_3(%arg0: i32) -> (i32, i32, i32) {
    %c0_i32 = arith.constant 0 : i32
    %c0_i32_0 = arith.constant 0 : i32
    %c0_i32_1 = arith.constant 0 : i32
    return %arg0, %c0_i32, %c0_i32_0 : i32, i32, i32
  }
  func.func @transform_4(%arg0: i32) -> (i32, i32) {
    %c0_i32 = arith.constant 0 : i32
    %c0_i32_0 = arith.constant 0 : i32
    %c0_i32_1 = arith.constant 0 : i32
    return %c0_i32, %c0_i32_0 : i32, i32
  }
  func.func @transform_5(%arg0: i32) -> (i32, i32, i32) {
    %c0_i32 = arith.constant 0 : i32
    %c0_i32_0 = arith.constant 0 : i32
    %c0_i32_1 = arith.constant 0 : i32
    return %arg0, %c0_i32, %c0_i32_0 : i32, i32, i32
  }
  func.func @transform_6(%arg0: i32) -> (i32, i32) {
    %c0_i32 = arith.constant 0 : i32
    %c0_i32_0 = arith.constant 0 : i32
    %c0_i32_1 = arith.constant 0 : i32
    return %c0_i32, %c0_i32_0 : i32, i32
  }
  func.func @transform_7(%arg0: i32) -> (i32, i32) {
    %c0_i32 = arith.constant 0 : i32
    %c0_i32_0 = arith.constant 0 : i32
    %c0_i32_1 = arith.constant 0 : i32
    return %c0_i32, %c0_i32_0 : i32, i32
  }
  func.func @transform_8(%arg0: i32) -> (i32, i32) {
    %c0_i32 = arith.constant 0 : i32
    %c0_i32_0 = arith.constant 0 : i32
    %c0_i32_1 = arith.constant 0 : i32
    return %c0_i32, %c0_i32_0 : i32, i32
  }
  func.func @transform_9(%arg0: i32) -> (i32, i32, i32) {
    %c0_i32 = arith.constant 0 : i32
    %c0_i32_0 = arith.constant 0 : i32
    %c0_i32_1 = arith.constant 0 : i32
    return %arg0, %c0_i32, %c0_i32_0 : i32, i32, i32
  }
}

</mosaic_0001>

<llo_original>
// kernel: joint_model_forward.1
$region0: #{joint_model_forward.1}
  #allocation0 [shape = 'u32[]', space=smem, size = 0x4, offset = 0x4, fixed_abs, tag = 'smem constant byte address 0x4 - core index']
  #allocation1 [shape = 'u32[144,128]{1,0:T(1,128)}', space=vmem, size = 0x12000, scoped, tag = 'internal scratch']
  %s0 = inlined_call_operand.vmem [shape: bf16[2,16,48], index: 0, kind: input, shape index: {}]
  %s1 = inlined_call_operand.vmem [shape: bf16[48,32], index: 1, kind: input, shape index: {}]
  %s2 = inlined_call_operand.vmem [shape: f32[16,32], index: 2, kind: input, shape index: {}]
  %s3 = inlined_call_operand.vmem [shape: bf16[2,40,80], index: 3, kind: input, shape index: {}]
  %s4 = inlined_call_operand.vmem [shape: bf16[80,32], index: 4, kind: input, shape index: {}]
  %s5 = inlined_call_operand.vmem [shape: bf16[2,8,40], index: 5, kind: input, shape index: {}]
  %s6 = inlined_call_operand.vmem [shape: f32[2,32], index: 6, kind: input, shape index: {}]
  %s7 = inlined_call_operand.vmem [shape: bf16[32,5], index: 7, kind: input, shape index: {}]
  %s8 = inlined_call_operand.vmem [shape: bf16[32,5], index: 8, kind: input, shape index: {}]
  %s9 = inlined_call_operand.hbm [shape: f32[2,1,5], index: 9, kind: output, shape index: {}]
  %s10 = sld [smem:[#allocation0]]
  $region69: #{joint_model_forward.1} parent=0
    _
  %s12 = ssub.s32 1, %s10
  %s13 = scalar_select 0, %s12, %s10
  $region1: #{joint_model_forward.1} parent=0
    #allocation2 [shape = 'u8[1024]{0}', space=vmem, size = 0x400, scoped, tag = 'output window, operand 0']
    #allocation3 [shape = 's32[2]{0}', space=sflag, size = 0x8, scoped, tag = 'scoped memory for joint_model_forward.1']
    %14 = vsyncpa [#allocation3], 0
    %s15 = scalar_lea.sflag [#allocation3], 1
    %16 = vsyncpa %s15, 0
    loop: start=0, step=1, limit=4
    $region2: #{joint_model_forward.1} parent=1 // loop_pre_header
      _
    $region3: #{joint_model_forward.1} parent=1 // loop_header
      %s18 = sphi 0, %s22
      %p19 = scmp.ge.s32.totalorder %s18, 4
      %s28 = sphi 0, %s30
      %s31 = sphi 0, %s28
      %s32 = sphi 0, %s31
      %s48 = sphi 0, %s32
      %s52 = sphi 0, %s52
      %s54 = sphi 0, %s52
      %s55 = sphi 0, %s54
      %s69 = sphi 0, %s55
      %s73 = sphi 0, %s73
      %s75 = sphi 0, %s73
      %s76 = sphi 0, %s75
      %s90 = sphi 0, %s76
      %s96 = sphi 0, %s98
      %s99 = sphi 0, %s96
      %s100 = sphi 0, %s99
      %s116 = sphi 0, %s100
      %s120 = sphi 0, %s120
      %s122 = sphi 0, %s120
      %s123 = sphi 0, %s122
      %s137 = sphi 0, %s123
      %s143 = sphi 0, %s145
      %s146 = sphi 0, %s143
      %s147 = sphi 0, %s146
      %s163 = sphi 0, %s147
      %s167 = sphi 0, %s167
      %s169 = sphi 0, %s167
      %s170 = sphi 0, %s169
      %s184 = sphi 0, %s170
      %s188 = sphi 0, %s188
      %s190 = sphi 0, %s188
      %s191 = sphi 0, %s190
      %s205 = sphi 0, %s191
      %s209 = sphi 0, %s209
      %s211 = sphi 0, %s209
      %s212 = sphi 0, %s211
      %s226 = sphi 0, %s212
      %s232 = sphi 0, %s234
      %s235 = sphi 0, %s232
      %s236 = sphi 0, %s235
      %s252 = sphi 0, %s236
    $region4: #{joint_model_forward.1} parent=1 // loop_header_branch
      %21 = sbr.rel (%p19) target = $region8
    $region5: #{joint_model_forward.1} parent=1 // loop_body
      %s23 = ssub.s32 %s18, 1
      %s24 = ssub.s32 %s18, 2
      %s25 = sadd.s32 %s18, 1
      %s26 = ssub.s32 %s18, %s25
      %p27 = scmp.eq.s32.totalorder %s26, 0
      %s29 = sadd.s32 %s28, 1
      %s30 = scalar_select %p27, %s28, %s29
      %p33 = pneg %p27
      %p34 = scmp.eq.s32.totalorder %s18, 1
      %p35 = por %p33, %p34
      %p36 = scmp.ne.s32.totalorder %s28, %s31
      %p37 = scmp.eq.s32.totalorder %s18, 0
      %p38 = por %p36, %p37
      %p39 = scmp.ne.s32.totalorder %s28, %s31
      %p40 = scmp.eq.s32.totalorder %s23, 1
      %p41 = por %p39, %p40
      %p42 = scmp.ne.s32.totalorder %s31, %s32
      %p43 = scmp.eq.s32.totalorder %s23, 0
      %p44 = por %p42, %p43
      %p45 = scmp.ne.s32.totalorder %s31, %s32
      %p46 = scmp.eq.s32.totalorder %s24, 1
      %p47 = por %p45, %p46
      %p49 = scmp.ne.s32.totalorder %s32, %s48
      %p50 = scmp.eq.s32.totalorder %s24, 0
      %p51 = por %p49, %p50
      %s53 = sadd.s32 %s52, 1
      %p56 = scmp.eq.s32.totalorder %s18, 1
      %p57 = scmp.ne.s32.totalorder %s52, %s54
      %p58 = scmp.eq.s32.totalorder %s18, 0
      %p59 = por %p57, %p58
      %p60 = scmp.ne.s32.totalorder %s52, %s54
      %p61 = scmp.eq.s32.totalorder %s23, 1
      %p62 = por %p60, %p61
      %p63 = scmp.ne.s32.totalorder %s54, %s55
      %p64 = scmp.eq.s32.totalorder %s23, 0
      %p65 = por %p63, %p64
      %p66 = scmp.ne.s32.totalorder %s54, %s55
      %p67 = scmp.eq.s32.totalorder %s24, 1
      %p68 = por %p66, %p67
      %p70 = scmp.ne.s32.totalorder %s55, %s69
      %p71 = scmp.eq.s32.totalorder %s24, 0
      %p72 = por %p70, %p71
      %s74 = sadd.s32 %s73, 1
      %p77 = scmp.eq.s32.totalorder %s18, 1
      %p78 = scmp.ne.s32.totalorder %s73, %s75
      %p79 = scmp.eq.s32.totalorder %s18, 0
      %p80 = por %p78, %p79
      %p81 = scmp.ne.s32.totalorder %s73, %s75
      %p82 = scmp.eq.s32.totalorder %s23, 1
      %p83 = por %p81, %p82
      %p84 = scmp.ne.s32.totalorder %s75, %s76
      %p85 = scmp.eq.s32.totalorder %s23, 0
      %p86 = por %p84, %p85
      %p87 = scmp.ne.s32.totalorder %s75, %s76
      %p88 = scmp.eq.s32.totalorder %s24, 1
      %p89 = por %p87, %p88
      %p91 = scmp.ne.s32.totalorder %s76, %s90
      %p92 = scmp.eq.s32.totalorder %s24, 0
      %p93 = por %p91, %p92
      %s94 = ssub.s32 %s18, %s25
      %p95 = scmp.eq.s32.totalorder %s94, 0
      %s97 = sadd.s32 %s96, 1
      %s98 = scalar_select %p95, %s96, %s97
      %p101 = pneg %p95
      %p102 = scmp.eq.s32.totalorder %s18, 1
      %p103 = por %p101, %p102
      %p104 = scmp.ne.s32.totalorder %s96, %s99
      %p105 = scmp.eq.s32.totalorder %s18, 0
      %p106 = por %p104, %p105
      %p107 = scmp.ne.s32.totalorder %s96, %s99
      %p108 = scmp.eq.s32.totalorder %s23, 1
      %p109 = por %p107, %p108
      %p110 = scmp.ne.s32.totalorder %s99, %s100
      %p111 = scmp.eq.s32.totalorder %s23, 0
      %p112 = por %p110, %p111
      %p113 = scmp.ne.s32.totalorder %s99, %s100
      %p114 = scmp.eq.s32.totalorder %s24, 1
      %p115 = por %p113, %p114
      %p117 = scmp.ne.s32.totalorder %s100, %s116
      %p118 = scmp.eq.s32.totalorder %s24, 0
      %p119 = por %p117, %p118
      %s121 = sadd.s32 %s120, 1
      %p124 = scmp.eq.s32.totalorder %s18, 1
      %p125 = scmp.ne.s32.totalorder %s120, %s122
      %p126 = scmp.eq.s32.totalorder %s18, 0
      %p127 = por %p125, %p126
      %p128 = scmp.ne.s32.totalorder %s120, %s122
      %p129 = scmp.eq.s32.totalorder %s23, 1
      %p130 = por %p128, %p129
      %p131 = scmp.ne.s32.totalorder %s122, %s123
      %p132 = scmp.eq.s32.totalorder %s23, 0
      %p133 = por %p131, %p132
      %p134 = scmp.ne.s32.totalorder %s122, %s123
      %p135 = scmp.eq.s32.totalorder %s24, 1
      %p136 = por %p134, %p135
      %p138 = scmp.ne.s32.totalorder %s123, %s137
      %p139 = scmp.eq.s32.totalorder %s24, 0
      %p140 = por %p138, %p139
      %s141 = ssub.s32 %s18, %s25
      %p142 = scmp.eq.s32.totalorder %s141, 0
      %s144 = sadd.s32 %s143, 1
      %s145 = scalar_select %p142, %s143, %s144
      %p148 = pneg %p142
      %p149 = scmp.eq.s32.totalorder %s18, 1
      %p150 = por %p148, %p149
      %p151 = scmp.ne.s32.totalorder %s143, %s146
      %p152 = scmp.eq.s32.totalorder %s18, 0
      %p153 = por %p151, %p152
      %p154 = scmp.ne.s32.totalorder %s143, %s146
      %p155 = scmp.eq.s32.totalorder %s23, 1
      %p156 = por %p154, %p155
      %p157 = scmp.ne.s32.totalorder %s146, %s147
      %p158 = scmp.eq.s32.totalorder %s23, 0
      %p159 = por %p157, %p158
      %p160 = scmp.ne.s32.totalorder %s146, %s147
      %p161 = scmp.eq.s32.totalorder %s24, 1
      %p162 = por %p160, %p161
      %p164 = scmp.ne.s32.totalorder %s147, %s163
      %p165 = scmp.eq.s32.totalorder %s24, 0
      %p166 = por %p164, %p165
      %s168 = sadd.s32 %s167, 1
      %p171 = scmp.eq.s32.totalorder %s18, 1
      %p172 = scmp.ne.s32.totalorder %s167, %s169
      %p173 = scmp.eq.s32.totalorder %s18, 0
      %p174 = por %p172, %p173
      %p175 = scmp.ne.s32.totalorder %s167, %s169
      %p176 = scmp.eq.s32.totalorder %s23, 1
      %p177 = por %p175, %p176
      %p178 = scmp.ne.s32.totalorder %s169, %s170
      %p179 = scmp.eq.s32.totalorder %s23, 0
      %p180 = por %p178, %p179
      %p181 = scmp.ne.s32.totalorder %s169, %s170
      %p182 = scmp.eq.s32.totalorder %s24, 1
      %p183 = por %p181, %p182
      %p185 = scmp.ne.s32.totalorder %s170, %s184
      %p186 = scmp.eq.s32.totalorder %s24, 0
      %p187 = por %p185, %p186
      %s189 = sadd.s32 %s188, 1
      %p192 = scmp.eq.s32.totalorder %s18, 1
      %p193 = scmp.ne.s32.totalorder %s188, %s190
      %p194 = scmp.eq.s32.totalorder %s18, 0
      %p195 = por %p193, %p194
      %p196 = scmp.ne.s32.totalorder %s188, %s190
      %p197 = scmp.eq.s32.totalorder %s23, 1
      %p198 = por %p196, %p197
      %p199 = scmp.ne.s32.totalorder %s190, %s191
      %p200 = scmp.eq.s32.totalorder %s23, 0
      %p201 = por %p199, %p200
      %p202 = scmp.ne.s32.totalorder %s190, %s191
      %p203 = scmp.eq.s32.totalorder %s24, 1
      %p204 = por %p202, %p203
      %p206 = scmp.ne.s32.totalorder %s191, %s205
      %p207 = scmp.eq.s32.totalorder %s24, 0
      %p208 = por %p206, %p207
      %s210 = sadd.s32 %s209, 1
      %p213 = scmp.eq.s32.totalorder %s18, 1
      %p214 = scmp.ne.s32.totalorder %s209, %s211
      %p215 = scmp.eq.s32.totalorder %s18, 0
      %p216 = por %p214, %p215
      %p217 = scmp.ne.s32.totalorder %s209, %s211
      %p218 = scmp.eq.s32.totalorder %s23, 1
      %p219 = por %p217, %p218
      %p220 = scmp.ne.s32.totalorder %s211, %s212
      %p221 = scmp.eq.s32.totalorder %s23, 0
      %p222 = por %p220, %p221
      %p223 = scmp.ne.s32.totalorder %s211, %s212
      %p224 = scmp.eq.s32.totalorder %s24, 1
      %p225 = por %p223, %p224
      %p227 = scmp.ne.s32.totalorder %s212, %s226
      %p228 = scmp.eq.s32.totalorder %s24, 0
      %p229 = por %p227, %p228
      %s230 = ssub.s32 %s18, %s25
      %p231 = scmp.eq.s32.totalorder %s230, 0
      %s233 = sadd.s32 %s232, 1
      %s234 = scalar_select %p231, %s232, %s233
      %p237 = pneg %p231
      %p238 = scmp.eq.s32.totalorder %s18, 1
      %p239 = por %p237, %p238
      %p240 = scmp.ne.s32.totalorder %s232, %s235
      %p241 = scmp.eq.s32.totalorder %s18, 0
      %p242 = por %p240, %p241
      %p243 = scmp.ne.s32.totalorder %s232, %s235
      %p244 = scmp.eq.s32.totalorder %s23, 1
      %p245 = por %p243, %p244
      %p246 = scmp.ne.s32.totalorder %s235, %s236
      %p247 = scmp.eq.s32.totalorder %s23, 0
      %p248 = por %p246, %p247
      %p249 = scmp.ne.s32.totalorder %s235, %s236
      %p250 = scmp.eq.s32.totalorder %s24, 1
      %p251 = por %p249, %p250
      %p253 = scmp.ne.s32.totalorder %s236, %s252
      %p254 = scmp.eq.s32.totalorder %s24, 0
      %p255 = por %p253, %p254
      %p256 = scmp.le.s32.totalorder 1, %s18
      %p257 = scmp.lt.s32.totalorder %s18, 3
      %p258 = pnand %p256, %p257
      %p259 = pneg %p258
      // Predicated region
      $region9: #{joint_model_forward.1} parent=5 // pred_check
        _
      $region10: #{joint_model_forward.1} parent=5 // pred_check_branch
        %261 = sbr.rel (%p258) target = $region12
      $region11: #{joint_model_forward.1} parent=5 // pred_region
        %s262 = ssub.s32 %s18, 1
        // Predicated region
        $region13: #{joint_model_forward.1} parent=11 // pred_check
          %p263 = pneg %p65
        $region14: #{joint_model_forward.1} parent=11 // pred_check_branch
          %265 = sbr.rel (%p263) target = $region16
        $region15: #{joint_model_forward.1} parent=11 // pred_region
          _
        $region16: #{joint_model_forward.1} parent=11 // pred_fallthru
          _
        // Predicated region
        $region17: #{joint_model_forward.1} parent=11 // pred_check
          %p266 = pneg %p86
        $region18: #{joint_model_forward.1} parent=11 // pred_check_branch
          %268 = sbr.rel (%p266) target = $region20
        $region19: #{joint_model_forward.1} parent=11 // pred_region
          _
        $region20: #{joint_model_forward.1} parent=11 // pred_fallthru
          _
        // Predicated region
        $region21: #{joint_model_forward.1} parent=11 // pred_check
          %p269 = pneg %p133
        $region22: #{joint_model_forward.1} parent=11 // pred_check_branch
          %271 = sbr.rel (%p269) target = $region24
        $region23: #{joint_model_forward.1} parent=11 // pred_region
          _
        $region24: #{joint_model_forward.1} parent=11 // pred_fallthru
          _
        // Predicated region
        $region25: #{joint_model_forward.1} parent=11 // pred_check
          %p272 = pneg %p180
        $region26: #{joint_model_forward.1} parent=11 // pred_check_branch
          %274 = sbr.rel (%p272) target = $region28
        $region27: #{joint_model_forward.1} parent=11 // pred_region
          _
        $region28: #{joint_model_forward.1} parent=11 // pred_fallthru
          _
        // Predicated region
        $region29: #{joint_model_forward.1} parent=11 // pred_check
          %p275 = pneg %p201
        $region30: #{joint_model_forward.1} parent=11 // pred_check_branch
          %277 = sbr.rel (%p275) target = $region32
        $region31: #{joint_model_forward.1} parent=11 // pred_region
          _
        $region32: #{joint_model_forward.1} parent=11 // pred_fallthru
          _
        // Predicated region
        $region33: #{joint_model_forward.1} parent=11 // pred_check
          %p278 = pneg %p222
        $region34: #{joint_model_forward.1} parent=11 // pred_check_branch
          %280 = sbr.rel (%p278) target = $region36
        $region35: #{joint_model_forward.1} parent=11 // pred_region
          _
        $region36: #{joint_model_forward.1} parent=11 // pred_fallthru
          _
      $region12: #{joint_model_forward.1} parent=5 // pred_fallthru
        _
      %p281 = scmp.lt.s32.totalorder %s18, 2
      // Predicated region
      $region37: #{joint_model_forward.1} parent=5 // pred_check
        %p282 = pneg %p281
      $region38: #{joint_model_forward.1} parent=5 // pred_check_branch
        %284 = sbr.rel (%p282) target = $region40
      $region39: #{joint_model_forward.1} parent=5 // pred_region
        // Predicated region
        $region41: #{joint_model_forward.1} parent=39 // pred_check
          %p285 = pneg %p38
        $region42: #{joint_model_forward.1} parent=39 // pred_check_branch
          %287 = sbr.rel (%p285) target = $region44
        $region43: #{joint_model_forward.1} parent=39 // pred_region
          %p288 = scmp.lt.s32.totalorder %s18, 1
          %s289 = scalar_select %p288, %s18, 1
          %s290 = smul.addr %s289, 2
          %s291 = smul.addr %s290, 4
          %s292 = scalar_lea.vmem %s0, %s291
        $region44: #{joint_model_forward.1} parent=39 // pred_fallthru
          _
        // Predicated region
        $region45: #{joint_model_forward.1} parent=39 // pred_check
          %p293 = pneg %p106
        $region46: #{joint_model_forward.1} parent=39 // pred_check_branch
          %295 = sbr.rel (%p293) target = $region48
        $region47: #{joint_model_forward.1} parent=39 // pred_region
          %p296 = scmp.lt.s32.totalorder %s18, 1
          %s297 = scalar_select %p296, %s18, 1
          %s298 = smul.addr %s297, 5
          %s299 = smul.addr %s298, 4
          %s300 = scalar_lea.vmem %s3, %s299
        $region48: #{joint_model_forward.1} parent=39 // pred_fallthru
          _
        // Predicated region
        $region49: #{joint_model_forward.1} parent=39 // pred_check
          %p301 = pneg %p153
        $region50: #{joint_model_forward.1} parent=39 // pred_check_branch
          %303 = sbr.rel (%p301) target = $region52
        $region51: #{joint_model_forward.1} parent=39 // pred_region
          %p304 = scmp.lt.s32.totalorder %s18, 1
          %s305 = scalar_select %p304, %s18, 1
          %s306 = smul.addr %s305, 4
          %s307 = scalar_lea.vmem %s5, %s306
        $region52: #{joint_model_forward.1} parent=39 // pred_fallthru
          _
      $region40: #{joint_model_forward.1} parent=5 // pred_fallthru
        _
      %p308 = scmp.le.s32.totalorder 1, %s18
      %p309 = scmp.lt.s32.totalorder %s18, 3
      %p310 = pnand %p308, %p309
      %p311 = pneg %p310
      // Predicated region
      $region53: #{joint_model_forward.1} parent=5 // pred_check
        _
      $region54: #{joint_model_forward.1} parent=5 // pred_check_branch
        %313 = sbr.rel (%p310) target = $region56
      $region55: #{joint_model_forward.1} parent=5 // pred_region
        %s314 = ssub.s32 %s18, 1
        %p315 = scmp.lt.s32.totalorder %s23, 1
        %s316 = scalar_select %p315, %s23, 1
        %s317 = smul.addr %s316, 2
        %s318 = smul.addr %s317, 4
        %s319 = scalar_lea.vmem %s0, %s318
        %p320 = pneg %p44
        %p321 = pneg %p41
        %p322 = pneg %p65
        %p323 = pneg %p62
        %p324 = pneg %p86
        %p325 = pneg %p83
        %p326 = scmp.lt.s32.totalorder %s23, 1
        %s327 = scalar_select %p326, %s23, 1
        %s328 = smul.addr %s327, 5
        %s329 = smul.addr %s328, 4
        %s330 = scalar_lea.vmem %s3, %s329
        %p331 = pneg %p112
        %p332 = pneg %p109
        %p333 = pneg %p133
        %p334 = pneg %p130
        %p335 = scmp.lt.s32.totalorder %s23, 1
        %s336 = scalar_select %p335, %s23, 1
        %s337 = smul.addr %s336, 4
        %s338 = scalar_lea.vmem %s5, %s337
        %p339 = pneg %p159
        %p340 = pneg %p156
        %p341 = pneg %p180
        %p342 = pneg %p177
        %p343 = pneg %p201
        %p344 = pneg %p198
        %p345 = pneg %p222
        %p346 = pneg %p219
        %p347 = pneg %p248
        %p348 = pneg %p245
        %s349 = sand.u32 %s235, 1
        %s350 = scalar_lea.sflag [#allocation3], %s349
        %s351 = sand.u32 %s235, 1
        %s352 = scalar_lea.vmem [#allocation2], %s351
        %p353 = scmp.lt.s32.totalorder %s23, 1
        %s354 = scalar_select %p353, %s23, 1
        %s355 = smul.addr %s354, 2
        %s356 = smul.addr %s355, 4
        %s357 = scalar_lea.vmem %s0, %s356
        %p358 = scmp.lt.s32.totalorder %s23, 1
        %s359 = scalar_select %p358, %s23, 1
        %s360 = smul.addr %s359, 5
        %s361 = smul.addr %s360, 4
        %s362 = scalar_lea.vmem %s3, %s361
        %p363 = scmp.lt.s32.totalorder %s23, 1
        %s364 = scalar_select %p363, %s23, 1
        %s365 = smul.addr %s364, 4
        %s366 = scalar_lea.vmem %s5, %s365
        %v368 = vld [vmem:[%s357] sm:$0xf]
        %v369 = vld [vmem:[%s357 + $0x4] sm:$0xf]
        %v370 = vld [vmem:[%s1] sm:$0xf]
        %v371 = vld [vmem:[%s1 + $0x4] sm:$0xf]
        %v372 = vld [vmem:[%s1 + $0x8] sm:$0xf]
        %v373 = vld [vmem:[%s1 + $0xc] sm:$0xf]
        %v374 = vld [vmem:[%s1 + $0x10] sm:$0xf]
        %v375 = vld [vmem:[%s1 + $0x14] sm:$0xf]
        %v376 = vld [vmem:[%s2] sm:$0xff]
        %v377 = vld [vmem:[%s2 + $0x8] sm:$0xff]
        %v380 = vunpack.c.l.b16 %v368
        %v381 = vunpack.c.l.b16 %v369
        %v382 = vpack.c.b16 %v381, %v380
        %v389 = vunpack.c.l.b16 %v370
        %v390 = vunpack.c.l.b16 %v371
        %v391 = vunpack.c.l.b16 %v372
        %v392 = vunpack.c.l.b16 %v373
        %v393 = vunpack.c.l.b16 %v374
        %v394 = vunpack.c.l.b16 %v375
        %v395 = vpack.c.b16 %v390, %v389
        %v396 = vpack.c.b16 %v392, %v391
        %v397 = vpack.c.b16 %v394, %v393
        %vm401 = vcmask 392192
        %v403 = vsel %vm401, %v382, 0
        %405 = vmatprep.subr.bf16.mxu0 0
        %406 = vmatpush1.bf16.msra.mxu0 0
        %407 = vmatprep.subr.bf16.mxu0 0
        %408 = vmatpush1.bf16.msra.mxu0 0
        %409 = vmatprep.subr.bf16.mxu0 0
        %410 = vmatpush1.bf16.msra.mxu0 0
        %411 = vmatprep.subr.bf16.mxu0 0
        %412 = vmatpush1.bf16.msra.mxu0 0
        %413 = vmatprep.subr.bf16.mxu0 0
        %414 = vmatpush1.bf16.msra.mxu0 0
        %415 = vmatprep.subr.bf16.mxu0 0
        %416 = vmatpush1.bf16.msra.mxu0 %v397
        %417 = vmatprep.subr.bf16.mxu0 0
        %418 = vmatpush1.bf16.msra.mxu0 %v396
        %419 = vmatprep.subr.bf16.mxu0 0
        %420 = vmatpush1.bf16.msra.mxu0 %v395
        %421 = vmatprep.subr.bf16.mxu0 0
        %422 = vmatpush2.bf16.msra.mxu0 0
        %423 = vmatprep.subr.bf16.mxu0 0
        %424 = vmatpush2.bf16.msra.mxu0 0
        %425 = vmatprep.subr.bf16.mxu0 0
        %426 = vmatpush2.bf16.msra.mxu0 0
        %427 = vmatprep.subr.bf16.mxu0 0
        %428 = vmatpush2.bf16.msra.mxu0 0
        %429 = vmatprep.subr.bf16.mxu0 0
        %430 = vmatpush2.bf16.msra.mxu0 0
        %431 = vmatprep.subr.bf16.mxu0 0
        %432 = vmatpush2.bf16.msra.mxu0 0
        %433 = vmatprep.subr.bf16.mxu0 0
        %434 = vmatpush2.bf16.msra.mxu0 0
        %435 = vmatprep.subr.bf16.mxu0 0
        %436 = vmatpush2.bf16.msra.mxu0 0
        %437 = vmatprep.mubr.bf16.mxu0 0
        %438 = vmatmul.mubr.bf16.gmra.mxu0 %v403
        %v439 = vpop.f32.mrf.mxu0
        %v440 = vadd.f32 %v376, %v439
        %v441 = vpop.f32.mrf.mxu0
        %v442 = vpop.f32.mrf.mxu0
        %v443 = vadd.f32 %v377, %v442
        %v444 = vpop.f32.mrf.mxu0
        %445 = vdwg.mxu0
        %v446 = vmul.f32 %v440, %v440
        %v447 = vmul.f32 %v443, %v443
        %v448 = vmul.f32 %v440, %v446
        %v449 = vmul.f32 %v443, %v447
        %v450 = vmul.f32 %v448, 0.044715
        %v451 = vmul.f32 %v449, 0.044715
        %v452 = vadd.f32 %v440, %v450
        %v453 = vadd.f32 %v443, %v451
        %v454 = vmul.f32 %v452, 0.7978846
        %v455 = vmul.f32 %v453, 0.7978846
        %v456 = vtanh.pop %v454
        %v457 = vtanh.pop %v455
        %v458 = vadd.f32 %v456, 1.0
        %v459 = vadd.f32 %v457, 1.0
        %v460 = vmul.f32 %v458, 0.5
        %v461 = vmul.f32 %v459, 0.5
        %v462 = vmul.f32 %v440, %v460
        %v463 = vmul.f32 %v443, %v461
        %vm464 = vcmask 261120
        %v465 = vsel %vm464, %v462, 0.0
        %v466 = vsel %vm464, %v463, 0.0
        %v467 = vadd.f32 %v465, %v466
        %v468 = vrot.slane %v467, 4
        %v469 = vadd.f32 %v467, %v468
        %v470 = vrot.slane %v469, 2
        %v471 = vadd.f32 %v469, %v470
        %v472 = vrot.slane %v471, 1
        %v473 = vadd.f32 %v471, %v472
        %v474 = vld [vmem:[%s362] sm:$0xf]
        %v475 = vld [vmem:[%s362 + $0x4] sm:$0xf]
        %v476 = vld [vmem:[%s362 + $0x8] sm:$0xf]
        %v477 = vld [vmem:[%s362 + $0xc] sm:$0xf]
        %v478 = vld [vmem:[%s362 + $0x10] sm:$0xf]
        %v479 = vld [vmem:[%s4] sm:$0xf]
        %v480 = vld [vmem:[%s4 + $0x4] sm:$0xf]
        %v481 = vld [vmem:[%s4 + $0x8] sm:$0xf]
        %v482 = vld [vmem:[%s4 + $0xc] sm:$0xf]
        %v483 = vld [vmem:[%s4 + $0x10] sm:$0xf]
        %v484 = vld [vmem:[%s4 + $0x14] sm:$0xf]
        %v485 = vld [vmem:[%s4 + $0x18] sm:$0xf]
        %v486 = vld [vmem:[%s4 + $0x1c] sm:$0xf]
        %v487 = vld [vmem:[%s4 + $0x20] sm:$0xf]
        %v488 = vld [vmem:[%s4 + $0x24] sm:$0xf]
        %v494 = vunpack.c.l.b16 %v474
        %v495 = vunpack.c.l.b16 %v475
        %v496 = vunpack.c.l.b16 %v476
        %v497 = vunpack.c.l.b16 %v477
        %v498 = vunpack.c.l.b16 %v478
        %v499 = vpack.c.b16 %v495, %v494
        %v500 = vpack.c.b16 %v497, %v496
        %v501 = vpack.c.b16 %v498, %v498
        %v512 = vunpack.c.l.b16 %v479
        %v513 = vunpack.c.l.b16 %v480
        %v514 = vunpack.c.l.b16 %v481
        %v515 = vunpack.c.l.b16 %v482
        %v516 = vunpack.c.l.b16 %v483
        %v517 = vunpack.c.l.b16 %v484
        %v518 = vunpack.c.l.b16 %v485
        %v519 = vunpack.c.l.b16 %v486
        %v520 = vunpack.c.l.b16 %v487
        %v521 = vunpack.c.l.b16 %v488
        %v522 = vpack.c.b16 %v513, %v512
        %v523 = vpack.c.b16 %v515, %v514
        %v524 = vpack.c.b16 %v517, %v516
        %v525 = vpack.c.b16 %v519, %v518
        %v526 = vpack.c.b16 %v521, %v520
        %vm532 = vcmask 654336
        %v534 = vsel %vm532, %v499, 0
        %v537 = vsel %vm532, %v500, 0
        %v540 = vsel %vm532, %v501, 0
        %542 = vmatprep.subr.bf16.mxu0 0
        %543 = vmatpush1.bf16.msra.mxu0 0
        %544 = vmatprep.subr.bf16.mxu0 0
        %545 = vmatpush1.bf16.msra.mxu0 0
        %546 = vmatprep.subr.bf16.mxu0 0
        %547 = vmatpush1.bf16.msra.mxu0 0
        %548 = vmatprep.subr.bf16.mxu0 0
        %549 = vmatpush1.bf16.msra.mxu0 %v526
        %550 = vmatprep.subr.bf16.mxu0 0
        %551 = vmatpush1.bf16.msra.mxu0 %v525
        %552 = vmatprep.subr.bf16.mxu0 0
        %553 = vmatpush1.bf16.msra.mxu0 %v524
        %554 = vmatprep.subr.bf16.mxu0 0
        %555 = vmatpush1.bf16.msra.mxu0 %v523
        %556 = vmatprep.subr.bf16.mxu0 0
        %557 = vmatpush1.bf16.msra.mxu0 %v522
        %558 = vmatprep.subr.bf16.mxu0 0
        %559 = vmatpush2.bf16.msra.mxu0 0
        %560 = vmatprep.subr.bf16.mxu0 0
        %561 = vmatpush2.bf16.msra.mxu0 0
        %562 = vmatprep.subr.bf16.mxu0 0
        %563 = vmatpush2.bf16.msra.mxu0 0
        %564 = vmatprep.subr.bf16.mxu0 0
        %565 = vmatpush2.bf16.msra.mxu0 0
        %566 = vmatprep.subr.bf16.mxu0 0
        %567 = vmatpush2.bf16.msra.mxu0 0
        %568 = vmatprep.subr.bf16.mxu0 0
        %569 = vmatpush2.bf16.msra.mxu0 0
        %570 = vmatprep.subr.bf16.mxu0 0
        %571 = vmatpush2.bf16.msra.mxu0 0
        %572 = vmatprep.subr.bf16.mxu0 0
        %573 = vmatpush2.bf16.msra.mxu0 0
        %574 = vmatprep.mubr.bf16.mxu0 0
        %575 = vmatmul.mubr.bf16.gmra.mxu0 %v534
        %v576 = vpop.f32.mrf.mxu0
        %v577 = vadd.f32 0.0, %v576
        %v578 = vpop.f32.mrf.mxu0
        %v579 = vpop.f32.mrf.mxu0
        %v580 = vadd.f32 0.0, %v579
        %v581 = vpop.f32.mrf.mxu0
        %582 = vmatprep.mubr.bf16.mxu0 0
        %583 = vmatmul.mubr.bf16.gmra.mxu0 %v537
        %v584 = vpop.f32.mrf.mxu0
        %v585 = vadd.f32 0.0, %v584
        %v586 = vpop.f32.mrf.mxu0
        %v587 = vpop.f32.mrf.mxu0
        %v588 = vadd.f32 0.0, %v587
        %v589 = vpop.f32.mrf.mxu0
        %590 = vmatprep.mubr.bf16.mxu0 0
        %591 = vmatmul.mubr.bf16.gmra.mxu0 %v540
        %v592 = vpop.f32.mrf.mxu0
        %v593 = vadd.f32 0.0, %v592
        %v594 = vpop.f32.mrf.mxu0
        %v595 = vpop.f32.mrf.mxu0
        %v596 = vpop.f32.mrf.mxu0
        %597 = vdwg.mxu0
        %v598 = vld [vmem:[%s366] sm:$0xf]
        %v599 = vpack.c.bf16 %v580, %v577
        %v600 = vpack.c.bf16 %v588, %v585
        %v601 = vpack.c.bf16 %v593, %v593
        %v602 = vld [vmem:[%s6] sm:$0x1]
        %v603 = vlaneseq
        %v604 = vshrl.u32 %v603, 7
        %v605 = vsub.s32 0, %v604
        %v606 = vrot.slane %v602, %v605
        %vm607 = vcmask 326656
        %v609 = vsel %vm607, %v598, 0
        %vm611 = vcmask 1043456
        %v613 = vsel %vm611, %v601, 0
        %615 = vmatprep.subr.bf16.mxu0 0
        %616 = vmatpush1.bf16.msra.mxu0 0
        %617 = vmatprep.subr.bf16.mxu0 0
        %618 = vmatpush1.bf16.msra.mxu0 0
        %619 = vmatprep.subr.bf16.mxu0 0
        %620 = vmatpush1.bf16.msra.mxu0 0
        %621 = vmatprep.subr.bf16.mxu0 0
        %622 = vmatpush1.bf16.msra.mxu0 0
        %623 = vmatprep.subr.bf16.mxu0 0
        %624 = vmatpush1.bf16.msra.mxu0 0
        %625 = vmatprep.subr.bf16.mxu0 0
        %626 = vmatpush1.bf16.msra.mxu0 %v613
        %627 = vmatprep.subr.bf16.mxu0 0
        %628 = vmatpush1.bf16.msra.mxu0 %v600
        %629 = vmatprep.subr.bf16.mxu0 0
        %630 = vmatpush1.bf16.msra.mxu0 %v599
        %631 = vmatprep.subr.bf16.mxu0 0
        %632 = vmatpush2.bf16.msra.mxu0 0
        %633 = vmatprep.subr.bf16.mxu0 0
        %634 = vmatpush2.bf16.msra.mxu0 0
        %635 = vmatprep.subr.bf16.mxu0 0
        %636 = vmatpush2.bf16.msra.mxu0 0
        %637 = vmatprep.subr.bf16.mxu0 0
        %638 = vmatpush2.bf16.msra.mxu0 0
        %639 = vmatprep.subr.bf16.mxu0 0
        %640 = vmatpush2.bf16.msra.mxu0 0
        %641 = vmatprep.subr.bf16.mxu0 0
        %642 = vmatpush2.bf16.msra.mxu0 0
        %643 = vmatprep.subr.bf16.mxu0 0
        %644 = vmatpush2.bf16.msra.mxu0 0
        %645 = vmatprep.subr.bf16.mxu0 0
        %646 = vmatpush2.bf16.msra.mxu0 0
        %647 = vmatprep.mubr.bf16.mxu0 0
        %648 = vmatmul.mubr.bf16.gmra.mxu0 %v609
        %v649 = vpop.f32.mrf.mxu0
        %v650 = vadd.f32 %v606, %v649
        %v651 = vpop.f32.mrf.mxu0
        %v652 = vpop.f32.mrf.mxu0
        %v653 = vpop.f32.mrf.mxu0
        %654 = vdwg.mxu0
        %v655 = vmax.f32 %v650, 0.0
        %v656 = vsel %vm464, %v655, 0.0
        %v657 = vrot.slane %v656, 4
        %v658 = vadd.f32 %v656, %v657
        %v659 = vrot.slane %v658, 2
        %v660 = vadd.f32 %v658, %v659
        %v661 = vrot.slane %v660, 1
        %v662 = vadd.f32 %v660, %v661
        %v663 = vpack.c.bf16 %v473, %v473
        %v664 = vld [vmem:[%s7] sm:$0xf]
        %v665 = vld [vmem:[%s7 + $0x4] sm:$0xf]
        %v666 = vld [vmem:[%s7 + $0x8] sm:$0xf]
        %v667 = vld [vmem:[%s7 + $0xc] sm:$0xf]
        %v668 = vpack.c.bf16 %v662, %v662
        %v669 = vld [vmem:[%s8] sm:$0xf]
        %v670 = vld [vmem:[%s8 + $0x4] sm:$0xf]
        %v671 = vld [vmem:[%s8 + $0x8] sm:$0xf]
        %v672 = vld [vmem:[%s8 + $0xc] sm:$0xf]
        %v677 = vunpack.c.l.b16 %v669
        %v678 = vunpack.c.l.b16 %v670
        %v679 = vunpack.c.l.b16 %v671
        %v680 = vunpack.c.l.b16 %v672
        %v681 = vpack.c.b16 %v678, %v677
        %v682 = vpack.c.b16 %v680, %v679
        %v686 = vsel %vm464, %v668, 0
        %688 = vmatprep.subr.bf16.mxu0 0
        %689 = vmatpush1.bf16.msra.mxu0 0
        %690 = vmatprep.subr.bf16.mxu0 0
        %691 = vmatpush1.bf16.msra.mxu0 0
        %692 = vmatprep.subr.bf16.mxu0 0
        %693 = vmatpush1.bf16.msra.mxu0 0
        %694 = vmatprep.subr.bf16.mxu0 0
        %695 = vmatpush1.bf16.msra.mxu0 0
        %696 = vmatprep.subr.bf16.mxu0 0
        %697 = vmatpush1.bf16.msra.mxu0 0
        %698 = vmatprep.subr.bf16.mxu0 0
        %699 = vmatpush1.bf16.msra.mxu0 0
        %700 = vmatprep.subr.bf16.mxu0 0
        %701 = vmatpush1.bf16.msra.mxu0 %v682
        %702 = vmatprep.subr.bf16.mxu0 0
        %703 = vmatpush1.bf16.msra.mxu0 %v681
        %704 = vmatprep.subr.bf16.mxu0 0
        %705 = vmatpush2.bf16.msra.mxu0 0
        %706 = vmatprep.subr.bf16.mxu0 0
        %707 = vmatpush2.bf16.msra.mxu0 0
        %708 = vmatprep.subr.bf16.mxu0 0
        %709 = vmatpush2.bf16.msra.mxu0 0
        %710 = vmatprep.subr.bf16.mxu0 0
        %711 = vmatpush2.bf16.msra.mxu0 0
        %712 = vmatprep.subr.bf16.mxu0 0
        %713 = vmatpush2.bf16.msra.mxu0 0
        %714 = vmatprep.subr.bf16.mxu0 0
        %715 = vmatpush2.bf16.msra.mxu0 0
        %716 = vmatprep.subr.bf16.mxu0 0
        %717 = vmatpush2.bf16.msra.mxu0 0
        %718 = vmatprep.subr.bf16.mxu0 0
        %719 = vmatpush2.bf16.msra.mxu0 0
        %720 = vmatprep.mubr.bf16.mxu0 0
        %721 = vmatmul.mubr.bf16.gmra.mxu0 %v686
        %v722 = vpop.f32.mrf.mxu0
        %v723 = vadd.f32 0.0, %v722
        %v724 = vpop.f32.mrf.mxu0
        %v725 = vpop.f32.mrf.mxu0
        %v726 = vpop.f32.mrf.mxu0
        %727 = vdwg.mxu0
        %v732 = vunpack.c.l.b16 %v664
        %v733 = vunpack.c.l.b16 %v665
        %v734 = vunpack.c.l.b16 %v666
        %v735 = vunpack.c.l.b16 %v667
        %v736 = vpack.c.b16 %v733, %v732
        %v737 = vpack.c.b16 %v735, %v734
        %v741 = vsel %vm464, %v663, 0
        %743 = vmatprep.subr.bf16.mxu0 0
        %744 = vmatpush1.bf16.msra.mxu0 0
        %745 = vmatprep.subr.bf16.mxu0 0
        %746 = vmatpush1.bf16.msra.mxu0 0
        %747 = vmatprep.subr.bf16.mxu0 0
        %748 = vmatpush1.bf16.msra.mxu0 0
        %749 = vmatprep.subr.bf16.mxu0 0
        %750 = vmatpush1.bf16.msra.mxu0 0
        %751 = vmatprep.subr.bf16.mxu0 0
        %752 = vmatpush1.bf16.msra.mxu0 0
        %753 = vmatprep.subr.bf16.mxu0 0
        %754 = vmatpush1.bf16.msra.mxu0 0
        %755 = vmatprep.subr.bf16.mxu0 0
        %756 = vmatpush1.bf16.msra.mxu0 %v737
        %757 = vmatprep.subr.bf16.mxu0 0
        %758 = vmatpush1.bf16.msra.mxu0 %v736
        %759 = vmatprep.subr.bf16.mxu0 0
        %760 = vmatpush2.bf16.msra.mxu0 0
        %761 = vmatprep.subr.bf16.mxu0 0
        %762 = vmatpush2.bf16.msra.mxu0 0
        %763 = vmatprep.subr.bf16.mxu0 0
        %764 = vmatpush2.bf16.msra.mxu0 0
        %765 = vmatprep.subr.bf16.mxu0 0
        %766 = vmatpush2.bf16.msra.mxu0 0
        %767 = vmatprep.subr.bf16.mxu0 0
        %768 = vmatpush2.bf16.msra.mxu0 0
        %769 = vmatprep.subr.bf16.mxu0 0
        %770 = vmatpush2.bf16.msra.mxu0 0
        %771 = vmatprep.subr.bf16.mxu0 0
        %772 = vmatpush2.bf16.msra.mxu0 0
        %773 = vmatprep.subr.bf16.mxu0 0
        %774 = vmatpush2.bf16.msra.mxu0 0
        %775 = vmatprep.mubr.bf16.mxu0 0
        %776 = vmatmul.mubr.bf16.gmra.mxu0 %v741
        %v777 = vpop.f32.mrf.mxu0
        %v778 = vadd.f32 %v723, %v777
        %v779 = vpop.f32.mrf.mxu0
        %v780 = vpop.f32.mrf.mxu0
        %v781 = vpop.f32.mrf.mxu0
        %782 = vdwg.mxu0
        %v783 = vld [vmem:[%s6 + $0x1] sm:$0x1]
        %v784 = vadd.f32 %v778, %v783
        %vm785 = vcmask 32768
        %v786 = vsel %vm785, %v784, -inf
        %787 = vmax.xlane.f32.xlu0 %v786
        %v788 = vpop.xlane.xlu0 %787
        %v789 = vsub.f32 %v784, %v788
        %v790 = vmul.f32 %v789, 1.442695
        %v791 = vpow.pop %v790
        %v792 = vsel %vm785, %v791, 0.0
        %793 = vadd.xlane.f32.xlu0 %v792
        %v794 = vpop.xlane.xlu0 %793
        %v795 = vrcp.pop %v794
        %v796 = vmul.f32 %v791, %v795
        %797 = vst.msk [vmem:[%s352] sm:$0x1] %vm785, %v796
        %s798 = sand.u32 %s235, 1
        %s799 = scalar_lea.sflag [#allocation3], %s798
        %s800 = sand.u32 %s235, 1
        %s801 = scalar_lea.vmem [#allocation2], %s800
        // Predicated region
        $region57: #{joint_model_forward.1} parent=55 // pred_check
          %p802 = pneg %p245
        $region58: #{joint_model_forward.1} parent=55 // pred_check_branch
          %804 = sbr.rel (%p802) target = $region60
        $region59: #{joint_model_forward.1} parent=55 // pred_region
          %s806 = ssub.s32 16, 16
          %807 = vsyncadd %s799, %s806
          %s808 = smul.addr %s23, 16
          %s809 = scalar_lea.hbm %s9, %s808
          %s811 = sshll.u32 %s801, 4
          %s812 = int_to_ptr.vmem [resolvable:$true] %s811
          %814 = dma.vmem_to_hbm [thread:$0]  %s812, 16, %s809, %s799
        $region60: #{joint_model_forward.1} parent=55 // pred_fallthru
          _
      $region56: #{joint_model_forward.1} parent=5 // pred_fallthru
        _
      %p815 = scmp.le.s32.totalorder 2, %s18
      // Predicated region
      $region61: #{joint_model_forward.1} parent=5 // pred_check
        %p816 = pneg %p815
      $region62: #{joint_model_forward.1} parent=5 // pred_check_branch
        %818 = sbr.rel (%p816) target = $region64
      $region63: #{joint_model_forward.1} parent=5 // pred_region
        %s819 = ssub.s32 %s18, 2
        // Predicated region
        $region65: #{joint_model_forward.1} parent=63 // pred_check
          %p820 = pneg %p251
        $region66: #{joint_model_forward.1} parent=63 // pred_check_branch
          %822 = sbr.rel (%p820) target = $region68
        $region67: #{joint_model_forward.1} parent=63 // pred_region
          %s823 = sand.u32 %s236, 1
          %s824 = scalar_lea.sflag [#allocation3], %s823
          %s825 = sand.u32 %s236, 1
          %s826 = scalar_lea.vmem [#allocation2], %s825
          %827 = dma.done %s824, 16
        $region68: #{joint_model_forward.1} parent=63 // pred_fallthru
          _
      $region64: #{joint_model_forward.1} parent=5 // pred_fallthru
        _
    $region6: #{joint_model_forward.1} parent=1 // loop_footer
      %s22 = sadd.s32 1, %s18
    $region7: #{joint_model_forward.1} parent=1 // loop_footer_branch
      %17 = sbr.rel target = $region3
    $region8: #{joint_model_forward.1} parent=1 // loop_exit
      _
    %828 = vsyncpa [#allocation3], 1
    %s829 = scalar_lea.sflag [#allocation3], 1
    %830 = vsyncpa %s829, 1

</llo_original>
